<compile_context>
chip_gen: v7x
topology: tpu7x:2x2x1
jax: 0.10.0
libtpu: 0.0.40
codegen_flags: <defaults>
</compile_context>

<pallas_src>
import math
from typing import NamedTuple, Optional

import jax
import jax.numpy as jnp
import numpy as np
from jax.experimental import pallas as pl
from jax.experimental.pallas import tpu as pltpu


LANE = 128      # lane width: last-dim tiles padded to multiples of this
SUBLANE = 16    # row-tile granularity (bf16-safe sublane multiple)
MAX_TM = 256    # row tile cap, matches 256-wide MXU on v6e/v7x
MAX_TK = 2048   # adj column tile cap -> bounds VMEM per grid step


def _round_up(v: int, m: int) -> int:
    return ((v + m - 1) // m) * m


def _pick_tiles(n: int):
    """Row tile TM (aim for >= 8 grid steps, cap 256) and adj column tile TK."""
    tm = max(SUBLANE, min(MAX_TM, pl.next_power_of_2(pl.cdiv(n, 8))))
    tk = max(LANE, min(MAX_TK, pl.next_power_of_2(n)))
    return tm, tk


def _vmem_limit(*byte_terms: int) -> int:
    # 2x headroom over the double-buffered block estimate, clamped to a range that is
    # safe on v5e (16 MiB scoped default) through v7x (64 MiB physical).
    est = 2 * sum(byte_terms)
    return int(min(max(est, 16 * 2**20), 64 * 2**20))


# -----------------------------------------------------------------------------
# One-time adjacency preparation (pad + cast, done at model-init time)
# -----------------------------------------------------------------------------
class PreparedAdj(NamedTuple):
    adj_p: jax.Array   # (n_pad, n_pad) in the compute dtype, zero-padded
    n: int
    n_pad: int
    tm: int
    tk: int


def prepare_adj(adj, *, compute_dtype=jnp.bfloat16,
                tm: Optional[int] = None, tk: Optional[int] = None) -> PreparedAdj:
    """Pad + cast the normalized adjacency once; reuse it for every forward/layer.

    adj is constant across layers and iterations, so building the padded,
    narrow-dtype copy here (instead of per call) removes an N_pad^2 HBM write +
    N^2 read from every forward of an HBM-bound kernel.  bf16 is the default:
    it halves adj traffic with negligible accuracy impact for normalized weights.
    """
    n = adj.shape[0]
    assert adj.shape == (n, n)
    auto_tm, auto_tk = _pick_tiles(n)
    tm = int(tm or auto_tm)
    tk = int(tk or auto_tk)
    n_pad = _round_up(n, math.lcm(tm, tk))
    adj_p = jnp.zeros((n_pad, n_pad), compute_dtype).at[:n, :n].set(
        adj.astype(compute_dtype))
    return PreparedAdj(adj_p, n, n_pad, tm, tk)


# -----------------------------------------------------------------------------
# Pallas kernels
# -----------------------------------------------------------------------------
def _xw_kernel(x_ref, w_ref, h_ref):
    # One row tile of h = x @ W; f32 accumulation on the MXU, stored in compute dtype.
    h_ref[...] = jnp.dot(x_ref[...], w_ref[...],
                         preferred_element_type=jnp.float32).astype(h_ref.dtype)


def _agg_kernel(adj_ref, h_ref, b_ref, o_ref, acc_ref):
    # One (row tile, column tile) step of out = adj @ h + bias, with an f32 VMEM
    # accumulator across the K (adj column) axis.
    k = pl.program_id(1)

    @pl.when(k == 0)
    def _init():
        acc_ref[...] = jnp.zeros_like(acc_ref)

    acc_ref[...] += jnp.dot(adj_ref[...], h_ref[...],
                            preferred_element_type=jnp.float32)

    @pl.when(k == pl.num_programs(1) - 1)
    def _finalize():
        o_ref[...] = (acc_ref[...] + b_ref[...]).astype(o_ref.dtype)


# -----------------------------------------------------------------------------
# Layer forward:  out = adj @ (x @ W) + b
# -----------------------------------------------------------------------------
def graph_convolution_res(prepared: PreparedAdj, x, weight, bias, *,
                          out_dtype=None, x_is_padded: bool = False,
                          return_padded: bool = False,
                          single_buffer_resident: bool = False):
    """GraphConvolutionRes forward using a pre-padded/cast adjacency.

    x_is_padded / return_padded let a deep stack keep activations in the padded
    (N_pad, F_pad) layout across layers and slice only once at the end.
    """
    n, n_pad, tm, tk = prepared.n, prepared.n_pad, prepared.tm, prepared.tk
    cdt = prepared.adj_p.dtype
    fin, fout = weight.shape
    fin_pad = _round_up(fin, LANE)
    fout_pad = _round_up(fout, LANE)
    out_dtype = out_dtype or x.dtype
    c_itm = np.dtype(cdt).itemsize
    o_itm = np.dtype(out_dtype).itemsize

    # --- feature-side padding (skippable when the deep stack keeps x padded) ---
    if x_is_padded:
        x_p = x.astype(cdt)
        assert x_p.shape == (n_pad, fin_pad), (x_p.shape, (n_pad, fin_pad))
    else:
        x_p = jnp.zeros((n_pad, fin_pad), cdt).at[:n, :fin].set(x.astype(cdt))
    w_p = jnp.zeros((fin_pad, fout_pad), cdt).at[:fin, :fout].set(weight.astype(cdt))
    b_p = jnp.zeros((1, fout_pad), jnp.float32).at[0, :fout].set(
        bias.astype(jnp.float32))

    # --- stage 1: h = x @ W, computed once (NOT per adj row tile) ---
    h = pl.pallas_call(
        _xw_kernel,
        out_shape=jax.ShapeDtypeStruct((n_pad, fout_pad), cdt),
        grid=(n_pad // tm,),
        in_specs=[
            pl.BlockSpec((tm, fin_pad), lambda i: (i, 0)),           # x row tile
            pl.BlockSpec((fin_pad, fout_pad), lambda i: (0, 0)),     # W (resident)
        ],
        out_specs=pl.BlockSpec((tm, fout_pad), lambda i: (i, 0)),
        compiler_params=pltpu.CompilerParams(
            dimension_semantics=("parallel",),
            vmem_limit_bytes=_vmem_limit(
                2 * tm * fin_pad * c_itm,
                2 * fin_pad * fout_pad * c_itm,
                2 * tm * fout_pad * c_itm)),
    )(x_p, w_p)

    # --- stage 2: out = adj @ h + bias, (TM rows) x (TK adj columns) grid ---
    grid = (n_pad // tm, n_pad // tk)

    h_kwargs, b_kwargs = {}, {}
    if single_buffer_resident:
        # Grid-invariant blocks do not need double-buffering; frees VMEM on v7x/v5e.
        b_kwargs["pipeline_mode"] = pl.Buffered(1)
        if grid[1] == 1:
            h_kwargs["pipeline_mode"] = pl.Buffered(1)

    out_p = pl.pallas_call(
        _agg_kernel,
        out_shape=jax.ShapeDtypeStruct((n_pad, fout_pad), out_dtype),
        grid=grid,
        in_specs=[
            pl.BlockSpec((tm, tk), lambda i, k: (i, k)),                    # adj tile
            pl.BlockSpec((tk, fout_pad), lambda i, k: (k, 0), **h_kwargs),  # h tile
            pl.BlockSpec((1, fout_pad), lambda i, k: (0, 0), **b_kwargs),   # bias
        ],
        out_specs=pl.BlockSpec((tm, fout_pad), lambda i, k: (i, 0)),
        scratch_shapes=[pltpu.VMEM((tm, fout_pad), jnp.float32)],
        compiler_params=pltpu.CompilerParams(
            dimension_semantics=("parallel", "arbitrary"),
            vmem_limit_bytes=_vmem_limit(
                2 * tm * tk * c_itm,
                2 * tk * fout_pad * c_itm,
                2 * tm * fout_pad * o_itm,
                tm * fout_pad * 4,
                fout_pad * 4)),
    )(prepared.adj_p, h, b_p)

    if return_padded:
        return out_p
    return out_p[:n, :fout]


# -----------------------------------------------------------------------------
# Deterministic graph construction (dilate_graph + normalize_adj equivalent),
# done as preprocessing glue with numpy / jax.random (no networkx/scipy needed).
# -----------------------------------------------------------------------------
def build_normalized_adj(num_nodes: int, key, d: int = 2):
    # Base graph: ring graph (each node connected to its two neighbors).
    adj = np.zeros((num_nodes, num_nodes), dtype=np.float32)
    for i in range(num_nodes):
        adj[i, (i + 1) % num_nodes] = 1.0
        adj[(i + 1) % num_nodes, i] = 1.0

    # dilate_graph: keep each edge with prob 1/d, always add self-loops.
    p = 1.0 / d
    probs = np.asarray(jax.random.uniform(key, (num_nodes, num_nodes)))
    keep = (probs < p).astype(np.float32)
    dil = adj * keep
    dil = np.maximum(dil, dil.T)     # undirected (edge kept if sampled either way)
    np.fill_diagonal(dil, 1.0)       # gn.add_edge(i, i)

    # normalize_adj: D^{-1/2} A D^{-1/2}
    deg = dil.sum(1)
    deg_sqrt_inv = 1.0 / np.sqrt(deg)
    adj_norm = dil * deg_sqrt_inv[:, None] * deg_sqrt_inv[None, :]
    return jnp.asarray(adj_norm, dtype=jnp.float32)


def xavier_uniform(key, shape, dtype=jnp.float32):
    fan_in, fan_out = shape
    limit = float(np.sqrt(6.0 / (fan_in + fan_out)))
    return jax.random.uniform(key, shape, dtype=dtype, minval=-limit, maxval=limit)


if __name__ == "__main__":
    # Small shapes consistent with the module: N nodes, F_in -> F_hid features.
    # N=512 with TM=64 gives an 8-step row grid (pipelining + megacore both active).
    N, F_IN, F_HID = 512, 64, 32

    key = jax.random.PRNGKey(0)
    k_adj, k_x, k_w1, k_b1, k_w2, k_b2 = jax.random.split(key, 6)

    adj = build_normalized_adj(N, k_adj, d=2)
    x = jax.random.normal(k_x, (N, F_IN), dtype=jnp.float32)
    w1 = xavier_uniform(k_w1, (F_IN, F_HID))
    b1 = 0.1 * jax.random.normal(k_b1, (F_HID,), dtype=jnp.float32)
    w2 = xavier_uniform(k_w2, (F_HID, F_HID))
    b2 = 0.1 * jax.random.normal(k_b2, (F_HID,), dtype=jnp.float32)

    adj_np = np.asarray(adj, dtype=np.float64)
    x_np = np.asarray(x, dtype=np.float64)
    w1_np, b1_np = np.asarray(w1, np.float64), np.asarray(b1, np.float64)
    w2_np, b2_np = np.asarray(w2, np.float64), np.asarray(b2, np.float64)

    # Note: despite the "Res" name, the reference forward has no residual term;
    # it is exactly adj @ (x @ W) + bias, which is what the kernels compute.

    # ---- f32 path (reference-precision check); adj padded/cast ONCE ----
    prep_f32 = prepare_adj(adj, compute_dtype=jnp.float32)
    out1 = jax.block_until_ready(graph_convolution_res(prep_f32, x, w1, b1))
    ref1 = adj_np @ (x_np @ w1_np) + b1_np
    np.testing.assert_allclose(np.asarray(out1, np.float64), ref1,
                               rtol=2e-3, atol=2e-3)

    # ---- two stacked layers, activations kept padded between layers ----
    h1_p = graph_convolution_res(prep_f32, x, w1, b1, return_padded=True)
    out2 = jax.block_until_ready(
        graph_convolution_res(prep_f32, h1_p, w2, b2, x_is_padded=True))
    ref2 = adj_np @ (ref1 @ w2_np) + b2_np
    np.testing.assert_allclose(np.asarray(out2, np.float64), ref2,
                               rtol=5e-3, atol=5e-3)

    # ---- bf16-adj path (default): bf16 operands, f32 accumulation + epilogue ----
    prep_bf16 = prepare_adj(adj)   # compute_dtype defaults to bf16
    out_bf = jax.block_until_ready(graph_convolution_res(prep_bf16, x, w1, b1))

    def _bf16(a):
        return np.asarray(jnp.asarray(a).astype(jnp.bfloat16).astype(jnp.float32),
                          dtype=np.float64)

    h_b = _bf16(_bf16(x) @ _bf16(w1))           # kernel stores h in bf16
    ref_b = _bf16(adj) @ h_b + b1_np
    np.testing.assert_allclose(np.asarray(out_bf, np.float64), ref_b,
                               rtol=2e-2, atol=2e-2)

    print("KERNEL_OK")
</pallas_src>

<mosaic_0001>
module attributes {stable_mosaic.version = 11 : i64} {
  func.func @_xw_kernel(%arg0: i32, %arg1: memref<64x128xf32, #tpu.memory_space<vmem>>, %arg2: memref<128x128xf32, #tpu.memory_space<vmem>>, %arg3: memref<64x128xf32, #tpu.memory_space<vmem>>) attributes {dimension_semantics = [#tpu.dimension_semantics<parallel>], iteration_bounds = array<i64: 8>, scalar_prefetch = 0 : i64, scratch_operands = 0 : i64, tpu.core_type = #tpu.core_type<tc>, window_params = [{transform_indices = @transform_0, window_bounds = array<i64: 64, 128>}, {pipeline_mode = #tpu.pipeline_mode<synchronous>, transform_indices = @transform_1, window_bounds = array<i64: 128, 128>}, {transform_indices = @transform_2, window_bounds = array<i64: 64, 128>}]} {
    %c0 = arith.constant 0 : index
    %c0_0 = arith.constant 0 : index
    %0 = vector.load %arg1[%c0, %c0_0] : memref<64x128xf32, #tpu.memory_space<vmem>>, vector<64x128xf32>
    %c0_1 = arith.constant 0 : index
    %c0_2 = arith.constant 0 : index
    %1 = vector.load %arg2[%c0_1, %c0_2] : memref<128x128xf32, #tpu.memory_space<vmem>>, vector<128x128xf32>
    %cst = arith.constant dense<0.000000e+00> : vector<64x128xf32>
    %2 = tpu.matmul %0, %1, %cst {dimension_numbers = #tpu.dot_dimension_numbers<[1], [0], [0], [1], [0, 0, 1, 1], [], []>} : vector<64x128xf32>, vector<128x128xf32>, vector<64x128xf32> -> vector<64x128xf32>
    %c0_3 = arith.constant 0 : index
    %c0_4 = arith.constant 0 : index
    %3 = vector.load %arg3[%c0_3, %c0_4] : memref<64x128xf32, #tpu.memory_space<vmem>>, vector<64x128xf32>
    tpu.vector_store %arg3[%c0_3, %c0_4], %2 {strides = array<i32>} : memref<64x128xf32, #tpu.memory_space<vmem>>, vector<64x128xf32>,
    return
  }
  func.func @transform_0(%arg0: i32) -> (i32, i32) {
    %c0_i32 = arith.constant 0 : i32
    %c0_i32_0 = arith.constant 0 : i32
    return %arg0, %c0_i32 : i32, i32
  }
  func.func @transform_1(%arg0: i32) -> (i32, i32) {
    %c0_i32 = arith.constant 0 : i32
    %c0_i32_0 = arith.constant 0 : i32
    %c0_i32_1 = arith.constant 0 : i32
    return %c0_i32, %c0_i32_0 : i32, i32
  }
  func.func @transform_2(%arg0: i32) -> (i32, i32) {
    %c0_i32 = arith.constant 0 : i32
    %c0_i32_0 = arith.constant 0 : i32
    return %arg0, %c0_i32 : i32, i32
  }
}

</mosaic_0001>

<llo_original>
// kernel: tpu_custom_call.1
$region0: #{tpu_custom_call.1}
  #allocation0 [shape = 'u32[]', space=smem, size = 0x4, offset = 0x4, fixed_abs, tag = 'smem constant byte address 0x4 - core index']
  #allocation1 [shape = 'u32[144,128]{1,0:T(1,128)}', space=vmem, size = 0x12000, scoped, tag = 'internal scratch']
  %s0 = inlined_call_operand.hbm [shape: f32[512,128], index: 0, kind: input, shape index: {}]
  %s1 = inlined_call_operand.hbm [shape: f32[128,128], index: 1, kind: input, shape index: {}]
  %s2 = inlined_call_operand.hbm [shape: f32[512,128], index: 2, kind: output, shape index: {}]
  %s3 = sld [smem:[#allocation0]]
  $region49: #{tpu_custom_call.1} parent=0
    _
  %s5 = ssub.s32 1, %s3
  %s6 = scalar_select 0, %s5, %s3
  $region1: #{tpu_custom_call.1} parent=0
    #allocation2 [shape = 'u8[65536]{0}', space=vmem, size = 0x10000, scoped, tag = 'input window, operand 0']
    #allocation3 [shape = 's32[2]{0}', space=sflag, size = 0x8, scoped, tag = 'scoped memory for tpu_custom_call.1']
    #allocation4 [shape = 's32[2]{0}', space=sflag, size = 0x8, scoped, tag = 'scoped memory for tpu_custom_call.1']
    #allocation5 [shape = 'u8[65536]{0}', space=vmem, size = 0x10000, scoped, tag = 'input window, operand 1, single buffered']
    #allocation6 [shape = 's32[1]{0}', space=sflag, size = 0x4, scoped, tag = 'scoped memory for tpu_custom_call.1']
    #allocation7 [shape = 'u8[65536]{0}', space=vmem, size = 0x10000, scoped, tag = 'output window, operand 0']
    %7 = vsyncpa [#allocation3], 0
    %s8 = scalar_lea.sflag [#allocation3], 1
    %9 = vsyncpa %s8, 0
    %10 = vsyncpa [#allocation6], 0
    %11 = vsyncpa [#allocation4], 0
    %s12 = scalar_lea.sflag [#allocation4], 1
    %13 = vsyncpa %s12, 0
    loop: start=0, step=1, limit=10
    $region2: #{tpu_custom_call.1} parent=1 // loop_pre_header
      _
    $region3: #{tpu_custom_call.1} parent=1 // loop_header
      %s15 = sphi 0, %s19
      %p16 = scmp.ge.s32.totalorder %s15, 10
      %s25 = sphi 0, %s27
      %s28 = sphi 0, %s25
      %s29 = sphi 0, %s28
      %s45 = sphi 0, %s29
      %s49 = sphi 0, %s49
      %s51 = sphi 0, %s49
      %s52 = sphi 0, %s51
      %s66 = sphi 0, %s52
      %s72 = sphi 0, %s74
      %s75 = sphi 0, %s72
      %s76 = sphi 0, %s75
      %s92 = sphi 0, %s76
    $region4: #{tpu_custom_call.1} parent=1 // loop_header_branch
      %18 = sbr.rel (%p16) target = $region8
    $region5: #{tpu_custom_call.1} parent=1 // loop_body
      %s20 = ssub.s32 %s15, 1
      %s21 = ssub.s32 %s15, 2
      %s22 = sadd.s32 %s15, 1
      %s23 = ssub.s32 %s15, %s22
      %p24 = scmp.eq.s32.totalorder %s23, 0
      %s26 = sadd.s32 %s25, 1
      %s27 = scalar_select %p24, %s25, %s26
      %p30 = pneg %p24
      %p31 = scmp.eq.s32.totalorder %s15, 7
      %p32 = por %p30, %p31
      %p33 = scmp.ne.s32.totalorder %s25, %s28
      %p34 = scmp.eq.s32.totalorder %s15, 0
      %p35 = por %p33, %p34
      %p36 = scmp.ne.s32.totalorder %s25, %s28
      %p37 = scmp.eq.s32.totalorder %s20, 7
      %p38 = por %p36, %p37
      %p39 = scmp.ne.s32.totalorder %s28, %s29
      %p40 = scmp.eq.s32.totalorder %s20, 0
      %p41 = por %p39, %p40
      %p42 = scmp.ne.s32.totalorder %s28, %s29
      %p43 = scmp.eq.s32.totalorder %s21, 7
      %p44 = por %p42, %p43
      %p46 = scmp.ne.s32.totalorder %s29, %s45
      %p47 = scmp.eq.s32.totalorder %s21, 0
      %p48 = por %p46, %p47
      %s50 = sadd.s32 %s49, 1
      %p53 = scmp.eq.s32.totalorder %s15, 7
      %p54 = scmp.ne.s32.totalorder %s49, %s51
      %p55 = scmp.eq.s32.totalorder %s15, 0
      %p56 = por %p54, %p55
      %p57 = scmp.ne.s32.totalorder %s49, %s51
      %p58 = scmp.eq.s32.totalorder %s20, 7
      %p59 = por %p57, %p58
      %p60 = scmp.ne.s32.totalorder %s51, %s52
      %p61 = scmp.eq.s32.totalorder %s20, 0
      %p62 = por %p60, %p61
      %p63 = scmp.ne.s32.totalorder %s51, %s52
      %p64 = scmp.eq.s32.totalorder %s21, 7
      %p65 = por %p63, %p64
      %p67 = scmp.ne.s32.totalorder %s52, %s66
      %p68 = scmp.eq.s32.totalorder %s21, 0
      %p69 = por %p67, %p68
      %s70 = ssub.s32 %s15, %s22
      %p71 = scmp.eq.s32.totalorder %s70, 0
      %s73 = sadd.s32 %s72, 1
      %s74 = scalar_select %p71, %s72, %s73
      %p77 = pneg %p71
      %p78 = scmp.eq.s32.totalorder %s15, 7
      %p79 = por %p77, %p78
      %p80 = scmp.ne.s32.totalorder %s72, %s75
      %p81 = scmp.eq.s32.totalorder %s15, 0
      %p82 = por %p80, %p81
      %p83 = scmp.ne.s32.totalorder %s72, %s75
      %p84 = scmp.eq.s32.totalorder %s20, 7
      %p85 = por %p83, %p84
      %p86 = scmp.ne.s32.totalorder %s75, %s76
      %p87 = scmp.eq.s32.totalorder %s20, 0
      %p88 = por %p86, %p87
      %p89 = scmp.ne.s32.totalorder %s75, %s76
      %p90 = scmp.eq.s32.totalorder %s21, 7
      %p91 = por %p89, %p90
      %p93 = scmp.ne.s32.totalorder %s76, %s92
      %p94 = scmp.eq.s32.totalorder %s21, 0
      %p95 = por %p93, %p94
      %p96 = scmp.le.s32.totalorder 1, %s15
      %p97 = scmp.lt.s32.totalorder %s15, 9
      %p98 = pnand %p96, %p97
      %p99 = pneg %p98
      // Predicated region
      $region9: #{tpu_custom_call.1} parent=5 // pred_check
        _
      $region10: #{tpu_custom_call.1} parent=5 // pred_check_branch
        %101 = sbr.rel (%p98) target = $region12
      $region11: #{tpu_custom_call.1} parent=5 // pred_region
        %s102 = ssub.s32 %s15, 1
        // Predicated region
        $region13: #{tpu_custom_call.1} parent=11 // pred_check
          %p103 = pneg %p62
        $region14: #{tpu_custom_call.1} parent=11 // pred_check_branch
          %105 = sbr.rel (%p103) target = $region16
        $region15: #{tpu_custom_call.1} parent=11 // pred_region
          %s107 = ssub.s32 2048, 2048
          %108 = vsyncadd [#allocation6], %s107
          %s109 = sshll.u32 [#allocation5], 4
          %s110 = int_to_ptr.vmem [resolvable:$true] %s109
          %115 = dma.hbm_to_vmem [thread:$0]  %s1, 2048, %s110, [#allocation6], 128, 128, 8
        $region16: #{tpu_custom_call.1} parent=11 // pred_fallthru
          _
      $region12: #{tpu_custom_call.1} parent=5 // pred_fallthru
        _
      %p116 = scmp.lt.s32.totalorder %s15, 8
      // Predicated region
      $region17: #{tpu_custom_call.1} parent=5 // pred_check
        %p117 = pneg %p116
      $region18: #{tpu_custom_call.1} parent=5 // pred_check_branch
        %119 = sbr.rel (%p117) target = $region20
      $region19: #{tpu_custom_call.1} parent=5 // pred_region
        // Predicated region
        $region21: #{tpu_custom_call.1} parent=19 // pred_check
          %p120 = pneg %p35
        $region22: #{tpu_custom_call.1} parent=19 // pred_check_branch
          %122 = sbr.rel (%p120) target = $region24
        $region23: #{tpu_custom_call.1} parent=19 // pred_region
          %s123 = sand.u32 %s25, 1
          %s124 = scalar_lea.sflag [#allocation3], %s123
          %s125 = sand.u32 %s25, 1
          %s126 = smul.addr %s125, 64
          %s127 = scalar_lea.vmem [#allocation2], %s126
          %s128 = smul.u32 8, %s15
          %s130 = ssub.s32 1024, 1024
          %131 = vsyncadd %s124, %s130
          %s132 = smul.addr %s128, 128
          %s133 = scalar_lea.hbm %s0, %s132
          %s134 = sshll.u32 %s127, 4
          %s135 = int_to_ptr.vmem [resolvable:$true] %s134
          %140 = dma.hbm_to_vmem [thread:$0]  %s133, 1024, %s135, %s124, 128, 128, 8
        $region24: #{tpu_custom_call.1} parent=19 // pred_fallthru
          _
      $region20: #{tpu_custom_call.1} parent=5 // pred_fallthru
        _
      %p141 = scmp.le.s32.totalorder 1, %s15
      %p142 = scmp.lt.s32.totalorder %s15, 9
      %p143 = pnand %p141, %p142
      %p144 = pneg %p143
      // Predicated region
      $region25: #{tpu_custom_call.1} parent=5 // pred_check
        _
      $region26: #{tpu_custom_call.1} parent=5 // pred_check_branch
        %146 = sbr.rel (%p143) target = $region28
      $region27: #{tpu_custom_call.1} parent=5 // pred_region
        %s147 = ssub.s32 %s15, 1
        %s148 = sand.u32 %s28, 1
        %s149 = scalar_lea.sflag [#allocation3], %s148
        %s150 = sand.u32 %s28, 1
        %s151 = smul.addr %s150, 64
        %s152 = scalar_lea.vmem [#allocation2], %s151
        // Predicated region
        $region29: #{tpu_custom_call.1} parent=27 // pred_check
          %p153 = pneg %p41
        $region30: #{tpu_custom_call.1} parent=27 // pred_check_branch
          %155 = sbr.rel (%p153) target = $region32
        $region31: #{tpu_custom_call.1} parent=27 // pred_region
          %156 = dma.done %s149, 1024
        $region32: #{tpu_custom_call.1} parent=27 // pred_fallthru
          _
        // Predicated region
        $region33: #{tpu_custom_call.1} parent=27 // pred_check
          %p157 = pneg %p62
        $region34: #{tpu_custom_call.1} parent=27 // pred_check_branch
          %159 = sbr.rel (%p157) target = $region36
        $region35: #{tpu_custom_call.1} parent=27 // pred_region
          %160 = dma.done [#allocation6], 2048
        $region36: #{tpu_custom_call.1} parent=27 // pred_fallthru
          _
        %s161 = sand.u32 %s28, 1
        %s162 = scalar_lea.sflag [#allocation3], %s161
        %s163 = sand.u32 %s28, 1
        %s164 = smul.addr %s163, 64
        %s165 = scalar_lea.vmem [#allocation2], %s164
        %p166 = pneg %p41
        %p167 = pneg %p38
        %p168 = pneg %p62
        %p169 = pneg %p59
        %p170 = pneg %p88
        %p171 = pneg %p85
        %s172 = sand.u32 %s75, 1
        %s173 = scalar_lea.sflag [#allocation4], %s172
        %s174 = sand.u32 %s75, 1
        %s175 = smul.addr %s174, 64
        %s176 = scalar_lea.vmem [#allocation7], %s175
        %s177 = smul.u32 8, %s20
        %s178 = smul.u32 8, %s20
        %v179 = vld [vmem:[%s152] sm:$0xff]
        %v180 = vld [vmem:[%s152 + $0x8] sm:$0xff]
        %v181 = vld [vmem:[%s152 + $0x10] sm:$0xff]
        %v182 = vld [vmem:[%s152 + $0x18] sm:$0xff]
        %v183 = vld [vmem:[%s152 + $0x20] sm:$0xff]
        %v184 = vld [vmem:[%s152 + $0x28] sm:$0xff]
        %v185 = vld [vmem:[%s152 + $0x30] sm:$0xff]
        %v186 = vld [vmem:[%s152 + $0x38] sm:$0xff]
        %v187 = vld [vmem:[#allocation5] sm:$0xff]
        %v188 = vld [vmem:[#allocation5 + $0x8] sm:$0xff]
        %v189 = vld [vmem:[#allocation5 + $0x10] sm:$0xff]
        %v190 = vld [vmem:[#allocation5 + $0x18] sm:$0xff]
        %v191 = vld [vmem:[#allocation5 + $0x20] sm:$0xff]
        %v192 = vld [vmem:[#allocation5 + $0x28] sm:$0xff]
        %v193 = vld [vmem:[#allocation5 + $0x30] sm:$0xff]
        %v194 = vld [vmem:[#allocation5 + $0x38] sm:$0xff]
        %v195 = vld [vmem:[#allocation5 + $0x40] sm:$0xff]
        %v196 = vld [vmem:[#allocation5 + $0x48] sm:$0xff]
        %v197 = vld [vmem:[#allocation5 + $0x50] sm:$0xff]
        %v198 = vld [vmem:[#allocation5 + $0x58] sm:$0xff]
        %v199 = vld [vmem:[#allocation5 + $0x60] sm:$0xff]
        %v200 = vld [vmem:[#allocation5 + $0x68] sm:$0xff]
        %v201 = vld [vmem:[#allocation5 + $0x70] sm:$0xff]
        %v202 = vld [vmem:[#allocation5 + $0x78] sm:$0xff]
        %203 = vmatprep.subr.mxu0 0.0
        %204 = vmatpush1.msra.mxu0 %v187
        %205 = vmatprep.subr.mxu0 0.0
        %206 = vmatpush1.msra.mxu0 %v188
        %207 = vmatprep.subr.mxu0 0.0
        %208 = vmatpush1.msra.mxu0 %v189
        %209 = vmatprep.subr.mxu0 0.0
        %210 = vmatpush1.msra.mxu0 %v190
        %211 = vmatprep.subr.mxu0 0.0
        %212 = vmatpush1.msra.mxu0 %v191
        %213 = vmatprep.subr.mxu0 0.0
        %214 = vmatpush1.msra.mxu0 %v192
        %215 = vmatprep.subr.mxu0 0.0
        %216 = vmatpush1.msra.mxu0 %v193
        %217 = vmatprep.subr.mxu0 0.0
        %218 = vmatpush1.msra.mxu0 %v194
        %219 = vmatprep.subr.mxu0 0.0
        %220 = vmatpush1.msra.mxu0 %v195
        %221 = vmatprep.subr.mxu0 0.0
        %222 = vmatpush1.msra.mxu0 %v196
        %223 = vmatprep.subr.mxu0 0.0
        %224 = vmatpush1.msra.mxu0 %v197
        %225 = vmatprep.subr.mxu0 0.0
        %226 = vmatpush1.msra.mxu0 %v198
        %227 = vmatprep.subr.mxu0 0.0
        %228 = vmatpush1.msra.mxu0 %v199
        %229 = vmatprep.subr.mxu0 0.0
        %230 = vmatpush1.msra.mxu0 %v200
        %231 = vmatprep.subr.mxu0 0.0
        %232 = vmatpush1.msra.mxu0 %v201
        %233 = vmatprep.subr.mxu0 0.0
        %234 = vmatpush1.msra.mxu0 %v202
        %235 = vmatprep.subr.mxu0 0.0
        %236 = vmatpush1.msra.mxu0 0.0
        %237 = vmatprep.subr.mxu0 0.0
        %238 = vmatpush1.msra.mxu0 0.0
        %239 = vmatprep.subr.mxu0 0.0
        %240 = vmatpush1.msra.mxu0 0.0
        %241 = vmatprep.subr.mxu0 0.0
        %242 = vmatpush1.msra.mxu0 0.0
        %243 = vmatprep.subr.mxu0 0.0
        %244 = vmatpush1.msra.mxu0 0.0
        %245 = vmatprep.subr.mxu0 0.0
        %246 = vmatpush1.msra.mxu0 0.0
        %247 = vmatprep.subr.mxu0 0.0
        %248 = vmatpush1.msra.mxu0 0.0
        %249 = vmatprep.subr.mxu0 0.0
        %250 = vmatpush1.msra.mxu0 0.0
        %251 = vmatprep.subr.mxu0 0.0
        %252 = vmatpush1.msra.mxu0 0.0
        %253 = vmatprep.subr.mxu0 0.0
        %254 = vmatpush1.msra.mxu0 0.0
        %255 = vmatprep.subr.mxu0 0.0
        %256 = vmatpush1.msra.mxu0 0.0
        %257 = vmatprep.subr.mxu0 0.0
        %258 = vmatpush1.msra.mxu0 0.0
        %259 = vmatprep.subr.mxu0 0.0
        %260 = vmatpush1.msra.mxu0 0.0
        %261 = vmatprep.subr.mxu0 0.0
        %262 = vmatpush1.msra.mxu0 0.0
        %263 = vmatprep.subr.mxu0 0.0
        %264 = vmatpush1.msra.mxu0 0.0
        %265 = vmatprep.subr.mxu0 0.0
        %266 = vmatpush1.msra.mxu0 0.0
        %267 = vmatprep.mubr.f32.mxu0 0.0
        %268 = vmatmul.mubr.f32.gmra.mrb[0].mxu0 %v179
        %v269 = vpop.f32.mrb[0].mxu0
        %v270 = vadd.f32 0.0, %v269
        %v271 = vpop.f32.mrb[0].mxu0
        %272 = vmatprep.mubr.f32.mxu0 0.0
        %273 = vmatmul.mubr.f32.gmra.mrb[0].mxu0 %v180
        %v274 = vpop.f32.mrb[0].mxu0
        %v275 = vadd.f32 0.0, %v274
        %v276 = vpop.f32.mrb[0].mxu0
        %277 = vmatprep.mubr.f32.mxu0 0.0
        %278 = vmatmul.mubr.f32.gmra.mrb[0].mxu0 %v181
        %v279 = vpop.f32.mrb[0].mxu0
        %v280 = vadd.f32 0.0, %v279
        %v281 = vpop.f32.mrb[0].mxu0
        %282 = vmatprep.mubr.f32.mxu0 0.0
        %283 = vmatmul.mubr.f32.gmra.mrb[0].mxu0 %v182
        %v284 = vpop.f32.mrb[0].mxu0
        %v285 = vadd.f32 0.0, %v284
        %v286 = vpop.f32.mrb[0].mxu0
        %287 = vmatprep.mubr.f32.mxu0 0.0
        %288 = vmatmul.mubr.f32.gmra.mrb[0].mxu0 %v183
        %v289 = vpop.f32.mrb[0].mxu0
        %v290 = vadd.f32 0.0, %v289
        %v291 = vpop.f32.mrb[0].mxu0
        %292 = vmatprep.mubr.f32.mxu0 0.0
        %293 = vmatmul.mubr.f32.gmra.mrb[0].mxu0 %v184
        %v294 = vpop.f32.mrb[0].mxu0
        %v295 = vadd.f32 0.0, %v294
        %v296 = vpop.f32.mrb[0].mxu0
        %297 = vmatprep.mubr.f32.mxu0 0.0
        %298 = vmatmul.mubr.f32.gmra.mrb[0].mxu0 %v185
        %v299 = vpop.f32.mrb[0].mxu0
        %v300 = vadd.f32 0.0, %v299
        %v301 = vpop.f32.mrb[0].mxu0
        %302 = vmatprep.mubr.f32.mxu0 0.0
        %303 = vmatmul.mubr.f32.gmra.mrb[0].mxu0 %v186
        %v304 = vpop.f32.mrb[0].mxu0
        %v305 = vadd.f32 0.0, %v304
        %v306 = vpop.f32.mrb[0].mxu0
        %307 = vdwg.mxu0
        %308 = vst [vmem:[%s176] sm:$0xff] %v270
        %309 = vst [vmem:[%s176 + $0x8] sm:$0xff] %v275
        %310 = vst [vmem:[%s176 + $0x10] sm:$0xff] %v280
        %311 = vst [vmem:[%s176 + $0x18] sm:$0xff] %v285
        %312 = vst [vmem:[%s176 + $0x20] sm:$0xff] %v290
        %313 = vst [vmem:[%s176 + $0x28] sm:$0xff] %v295
        %314 = vst [vmem:[%s176 + $0x30] sm:$0xff] %v300
        %315 = vst [vmem:[%s176 + $0x38] sm:$0xff] %v305
        %s316 = sand.u32 %s75, 1
        %s317 = scalar_lea.sflag [#allocation4], %s316
        %s318 = sand.u32 %s75, 1
        %s319 = smul.addr %s318, 64
        %s320 = scalar_lea.vmem [#allocation7], %s319
        // Predicated region
        $region37: #{tpu_custom_call.1} parent=27 // pred_check
          %p321 = pneg %p85
        $region38: #{tpu_custom_call.1} parent=27 // pred_check_branch
          %323 = sbr.rel (%p321) target = $region40
        $region39: #{tpu_custom_call.1} parent=27 // pred_region
          %s324 = smul.u32 8, %s20
          %s326 = ssub.s32 1024, 1024
          %327 = vsyncadd %s317, %s326
          %s328 = smul.addr %s324, 128
          %s329 = scalar_lea.hbm %s2, %s328
          %s330 = sshll.u32 %s320, 4
          %s331 = int_to_ptr.vmem [resolvable:$true] %s330
          %336 = dma.vmem_to_hbm [thread:$0]  %s331, 1024, %s329, %s317, 128, 128, 8
        $region40: #{tpu_custom_call.1} parent=27 // pred_fallthru
          _
      $region28: #{tpu_custom_call.1} parent=5 // pred_fallthru
        _
      %p337 = scmp.le.s32.totalorder 2, %s15
      // Predicated region
      $region41: #{tpu_custom_call.1} parent=5 // pred_check
        %p338 = pneg %p337
      $region42: #{tpu_custom_call.1} parent=5 // pred_check_branch
        %340 = sbr.rel (%p338) target = $region44
      $region43: #{tpu_custom_call.1} parent=5 // pred_region
        %s341 = ssub.s32 %s15, 2
        // Predicated region
        $region45: #{tpu_custom_call.1} parent=43 // pred_check
          %p342 = pneg %p91
        $region46: #{tpu_custom_call.1} parent=43 // pred_check_branch
          %344 = sbr.rel (%p342) target = $region48
        $region47: #{tpu_custom_call.1} parent=43 // pred_region
          %s345 = sand.u32 %s76, 1
          %s346 = scalar_lea.sflag [#allocation4], %s345
          %s347 = sand.u32 %s76, 1
          %s348 = smul.addr %s347, 64
          %s349 = scalar_lea.vmem [#allocation7], %s348
          %350 = dma.done %s346, 1024
        $region48: #{tpu_custom_call.1} parent=43 // pred_fallthru
          _
      $region44: #{tpu_custom_call.1} parent=5 // pred_fallthru
        _
    $region6: #{tpu_custom_call.1} parent=1 // loop_footer
      %s19 = sadd.s32 1, %s15
    $region7: #{tpu_custom_call.1} parent=1 // loop_footer_branch
      %14 = sbr.rel target = $region3
    $region8: #{tpu_custom_call.1} parent=1 // loop_exit
      _
    %351 = vsyncpa [#allocation3], 1
    %s352 = scalar_lea.sflag [#allocation3], 1
    %353 = vsyncpa %s352, 1
    %354 = vsyncpa [#allocation6], 1
    %355 = vsyncpa [#allocation4], 1
    %s356 = scalar_lea.sflag [#allocation4], 1
    %357 = vsyncpa %s356, 1

</llo_original>
